<compile_context>
chip_gen: v5e
topology: v5e:2x2
jax: 0.10.0
libtpu: 0.0.40
codegen_flags: <defaults>
</compile_context>

<pallas_src>
import jax
import jax.numpy as jnp
from jax import lax
from jax.experimental import pallas as pl
from jax.experimental.pallas import tpu as pltpu

_LANES = 128
_NUM_UNIFORMS = 12  # CLT: sum of 12 U(0,1) - 6  ~  N(0,1)


def _round_up(a, b):
    return ((a + b - 1) // b) * b


def _hash_uniform(ctr_u32, key_u32):
    """Counter-based hash -> uniform float32 in (0, 1). Pure VPU integer ops."""
    x = ctr_u32 * jnp.uint32(0x9E3779B9)          # Weyl spread of the counter
    x = x + key_u32
    x = x ^ jnp.right_shift(x, 16)
    x = x * jnp.uint32(0x7FEB352D)
    x = x ^ jnp.right_shift(x, 15)
    x = x * jnp.uint32(0x846CA68B)
    x = x ^ jnp.right_shift(x, 16)
    mant = jnp.right_shift(x, 9).astype(jnp.int32)           # 23 random bits, >= 0
    return (mant.astype(jnp.float32) + 0.5) * jnp.float32(1.0 / (1 << 23))


def _mock_randn_kernel(seed_ref, out_ref):
    """Fill out_ref (tile_rows, 128) with ~N(0,1) samples, keyed by global index."""
    tile_rows, lanes = out_ref.shape
    row0 = pl.program_id(0) * tile_rows

    r = lax.broadcasted_iota(jnp.int32, (tile_rows, lanes), 0)
    c = lax.broadcasted_iota(jnp.int32, (tile_rows, lanes), 1)
    # Global flat element index == position in the row-major flattened output,
    # so every grid step / TensorCore draws a distinct stream.
    ctr = ((row0 + r) * lanes + c).astype(jnp.uint32)

    key0 = seed_ref[0].astype(jnp.uint32) * jnp.uint32(0x85EBCA6B) + jnp.uint32(0x9E3779B9)

    acc = jnp.zeros((tile_rows, lanes), jnp.float32)
    for k in range(_NUM_UNIFORMS):  # unrolled at trace time
        key_k = key0 + jnp.uint32(((k + 1) * 0x68E31DA4) & 0xFFFFFFFF)
        acc = acc + _hash_uniform(ctr, key_k)

    out_ref[...] = acc - jnp.float32(_NUM_UNIFORMS * 0.5)


def mock_model_forward(x, output_size, seed=0):
    """Pallas equivalent of MockModel(output_size).forward(input) where input.x == x."""
    batch_size = x.shape[0]          # the only thing MockModel.forward reads from x
    total = batch_size * output_size

    # Lane-dense flattened layout: (rows, 128) float32, padded up to the tile.
    rows = pl.cdiv(total, _LANES)
    tile = min(512, _round_up(rows, 8))          # sublane-aligned, <=256 KiB/block
    rows_padded = _round_up(rows, tile)
    grid = rows_padded // tile

    seed_arr = jnp.array([seed], dtype=jnp.int32)

    n_elems = rows_padded * _LANES
    cost = pl.CostEstimate(
        flops=n_elems * (_NUM_UNIFORMS * 8 + 4),
        transcendentals=0,
        bytes_accessed=n_elems * 4,
    )

    flat = pl.pallas_call(
        _mock_randn_kernel,
        out_shape=jax.ShapeDtypeStruct((rows_padded, _LANES), jnp.float32),
        grid_spec=pltpu.PrefetchScalarGridSpec(
            num_scalar_prefetch=1,               # seed lands in SMEM before step 0
            grid=(grid,),
            in_specs=[],
            out_specs=pl.BlockSpec((tile, _LANES), lambda i, seed_ref: (i, 0)),
        ),
        compiler_params=pltpu.CompilerParams(
            dimension_semantics=("parallel",),   # megacore-shardable on v7x
            vmem_limit_bytes=32 * 1024 * 1024,   # safe on v7x's 64 MiB VMEM
        ),
        cost_estimate=cost,
    )(seed_arr)

    return flat.reshape(-1)[:total].reshape(batch_size, output_size)


if __name__ == "__main__":
    key = jax.random.PRNGKey(0)
    # Small graph: 32 nodes, 16 features per node -> batch_size = 32.
    x = jax.random.normal(key, (32, 16), dtype=jnp.float32)
    output_size = 8

    out = mock_model_forward(x, output_size, seed=0)
    out = jax.block_until_ready(out)

    assert out.shape == (32, output_size), out.shape
    assert out.dtype == jnp.float32, out.dtype
    assert bool(jnp.all(jnp.isfinite(out)))
    # Distributional sanity: ~N(0,1) over 256 samples.
    assert abs(float(jnp.mean(out))) < 0.4, float(jnp.mean(out))
    assert 0.5 < float(jnp.std(out)) < 1.5, float(jnp.std(out))
    # Samples must not be identical.
    assert float(jnp.std(out)) > 0.1

    print("KERNEL_OK")
</pallas_src>

<mosaic_0001>
module attributes {stable_mosaic.version = 11 : i64} {
  func.func @_mock_randn_kernel(%arg0: i32, %arg1: memref<1xi32, #tpu.memory_space<smem>>, %arg2: memref<8x128xf32, #tpu.memory_space<vmem>>) attributes {dimension_semantics = [#tpu.dimension_semantics<parallel>], iteration_bounds = array<i64: 1>, scalar_prefetch = 1 : i64, scratch_operands = 0 : i64, tpu.core_type = #tpu.core_type<tc>, window_params = [{transform_indices = @transform_0, window_bounds = array<i64: 8, 128>}]} {
    %c8_i32 = arith.constant 8 : i32
    %0 = arith.muli %arg0, %c8_i32 : i32
    %1 = tpu.iota {dimensions = array<i32: 0>} : vector<8x128xi32>
    %2 = tpu.iota {dimensions = array<i32: 1>} : vector<8x128xi32>
    %3 = vector.broadcast %0 : i32 to vector<8x128xi32>
    %4 = arith.addi %3, %1 : vector<8x128xi32>
    %c128_i32 = arith.constant 128 : i32
    %5 = vector.broadcast %c128_i32 : i32 to vector<8x128xi32>
    %6 = arith.muli %4, %5 : vector<8x128xi32>
    %7 = arith.addi %6, %2 : vector<8x128xi32>
    %c0 = arith.constant 0 : index
    %8 = memref.load %arg1[%c0] : memref<1xi32, #tpu.memory_space<smem>>
    %c-2048144789_i32 = arith.constant -2048144789 : i32
    %9 = arith.muli %8, %c-2048144789_i32 : i32
    %c-1640531527_i32 = arith.constant -1640531527 : i32
    %10 = arith.addi %9, %c-1640531527_i32 : i32
    %cst = arith.constant 0.000000e+00 : f32
    %11 = vector.broadcast %cst : f32 to vector<8x128xf32>
    %c1759714724_i32 = arith.constant 1759714724 : i32
    %12 = arith.addi %10, %c1759714724_i32 : i32
    %c-1640531527_i32_0 = arith.constant -1640531527 : i32
    %13 = vector.broadcast %c-1640531527_i32_0 : i32 to vector<8x128xi32>
    %14 = arith.muli %7, %13 : vector<8x128xi32>
    %15 = vector.broadcast %12 : i32 to vector<8x128xi32>
    %16 = arith.addi %14, %15 : vector<8x128xi32>
    %c16_i32 = arith.constant 16 : i32
    %17 = vector.broadcast %c16_i32 : i32 to vector<8x128xi32>
    %18 = arith.shrui %16, %17 : vector<8x128xi32>
    %19 = arith.xori %16, %18 : vector<8x128xi32>
    %c2146121005_i32 = arith.constant 2146121005 : i32
    %20 = vector.broadcast %c2146121005_i32 : i32 to vector<8x128xi32>
    %21 = arith.muli %19, %20 : vector<8x128xi32>
    %c15_i32 = arith.constant 15 : i32
    %22 = vector.broadcast %c15_i32 : i32 to vector<8x128xi32>
    %23 = arith.shrui %21, %22 : vector<8x128xi32>
    %24 = arith.xori %21, %23 : vector<8x128xi32>
    %c-2073254261_i32 = arith.constant -2073254261 : i32
    %25 = vector.broadcast %c-2073254261_i32 : i32 to vector<8x128xi32>
    %26 = arith.muli %24, %25 : vector<8x128xi32>
    %c16_i32_1 = arith.constant 16 : i32
    %27 = vector.broadcast %c16_i32_1 : i32 to vector<8x128xi32>
    %28 = arith.shrui %26, %27 : vector<8x128xi32>
    %29 = arith.xori %26, %28 : vector<8x128xi32>
    %c9_i32 = arith.constant 9 : i32
    %30 = vector.broadcast %c9_i32 : i32 to vector<8x128xi32>
    %31 = arith.shrui %29, %30 : vector<8x128xi32>
    %32 = arith.sitofp %31 : vector<8x128xi32> to vector<8x128xf32>
    %cst_2 = arith.constant 5.000000e-01 : f32
    %33 = vector.broadcast %cst_2 : f32 to vector<8x128xf32>
    %34 = arith.addf %32, %33 : vector<8x128xf32>
    %cst_3 = arith.constant 1.1920929E-7 : f32
    %35 = vector.broadcast %cst_3 : f32 to vector<8x128xf32>
    %36 = arith.mulf %34, %35 : vector<8x128xf32>
    %37 = arith.addf %11, %36 : vector<8x128xf32>
    %c-775537848_i32 = arith.constant -775537848 : i32
    %38 = arith.addi %10, %c-775537848_i32 : i32
    %c-1640531527_i32_4 = arith.constant -1640531527 : i32
    %39 = vector.broadcast %c-1640531527_i32_4 : i32 to vector<8x128xi32>
    %40 = arith.muli %7, %39 : vector<8x128xi32>
    %41 = vector.broadcast %38 : i32 to vector<8x128xi32>
    %42 = arith.addi %40, %41 : vector<8x128xi32>
    %c16_i32_5 = arith.constant 16 : i32
    %43 = vector.broadcast %c16_i32_5 : i32 to vector<8x128xi32>
    %44 = arith.shrui %42, %43 : vector<8x128xi32>
    %45 = arith.xori %42, %44 : vector<8x128xi32>
    %c2146121005_i32_6 = arith.constant 2146121005 : i32
    %46 = vector.broadcast %c2146121005_i32_6 : i32 to vector<8x128xi32>
    %47 = arith.muli %45, %46 : vector<8x128xi32>
    %c15_i32_7 = arith.constant 15 : i32
    %48 = vector.broadcast %c15_i32_7 : i32 to vector<8x128xi32>
    %49 = arith.shrui %47, %48 : vector<8x128xi32>
    %50 = arith.xori %47, %49 : vector<8x128xi32>
    %c-2073254261_i32_8 = arith.constant -2073254261 : i32
    %51 = vector.broadcast %c-2073254261_i32_8 : i32 to vector<8x128xi32>
    %52 = arith.muli %50, %51 : vector<8x128xi32>
    %c16_i32_9 = arith.constant 16 : i32
    %53 = vector.broadcast %c16_i32_9 : i32 to vector<8x128xi32>
    %54 = arith.shrui %52, %53 : vector<8x128xi32>
    %55 = arith.xori %52, %54 : vector<8x128xi32>
    %c9_i32_10 = arith.constant 9 : i32
    %56 = vector.broadcast %c9_i32_10 : i32 to vector<8x128xi32>
    %57 = arith.shrui %55, %56 : vector<8x128xi32>
    %58 = arith.sitofp %57 : vector<8x128xi32> to vector<8x128xf32>
    %cst_11 = arith.constant 5.000000e-01 : f32
    %59 = vector.broadcast %cst_11 : f32 to vector<8x128xf32>
    %60 = arith.addf %58, %59 : vector<8x128xf32>
    %cst_12 = arith.constant 1.1920929E-7 : f32
    %61 = vector.broadcast %cst_12 : f32 to vector<8x128xf32>
    %62 = arith.mulf %60, %61 : vector<8x128xf32>
    %63 = arith.addf %37, %62 : vector<8x128xf32>
    %c984176876_i32 = arith.constant 984176876 : i32
    %64 = arith.addi %10, %c984176876_i32 : i32
    %c-1640531527_i32_13 = arith.constant -1640531527 : i32
    %65 = vector.broadcast %c-1640531527_i32_13 : i32 to vector<8x128xi32>
    %66 = arith.muli %7, %65 : vector<8x128xi32>
    %67 = vector.broadcast %64 : i32 to vector<8x128xi32>
    %68 = arith.addi %66, %67 : vector<8x128xi32>
    %c16_i32_14 = arith.constant 16 : i32
    %69 = vector.broadcast %c16_i32_14 : i32 to vector<8x128xi32>
    %70 = arith.shrui %68, %69 : vector<8x128xi32>
    %71 = arith.xori %68, %70 : vector<8x128xi32>
    %c2146121005_i32_15 = arith.constant 2146121005 : i32
    %72 = vector.broadcast %c2146121005_i32_15 : i32 to vector<8x128xi32>
    %73 = arith.muli %71, %72 : vector<8x128xi32>
    %c15_i32_16 = arith.constant 15 : i32
    %74 = vector.broadcast %c15_i32_16 : i32 to vector<8x128xi32>
    %75 = arith.shrui %73, %74 : vector<8x128xi32>
    %76 = arith.xori %73, %75 : vector<8x128xi32>
    %c-2073254261_i32_17 = arith.constant -2073254261 : i32
    %77 = vector.broadcast %c-2073254261_i32_17 : i32 to vector<8x128xi32>
    %78 = arith.muli %76, %77 : vector<8x128xi32>
    %c16_i32_18 = arith.constant 16 : i32
    %79 = vector.broadcast %c16_i32_18 : i32 to vector<8x128xi32>
    %80 = arith.shrui %78, %79 : vector<8x128xi32>
    %81 = arith.xori %78, %80 : vector<8x128xi32>
    %c9_i32_19 = arith.constant 9 : i32
    %82 = vector.broadcast %c9_i32_19 : i32 to vector<8x128xi32>
    %83 = arith.shrui %81, %82 : vector<8x128xi32>
    %84 = arith.sitofp %83 : vector<8x128xi32> to vector<8x128xf32>
    %cst_20 = arith.constant 5.000000e-01 : f32
    %85 = vector.broadcast %cst_20 : f32 to vector<8x128xf32>
    %86 = arith.addf %84, %85 : vector<8x128xf32>
    %cst_21 = arith.constant 1.1920929E-7 : f32
    %87 = vector.broadcast %cst_21 : f32 to vector<8x128xf32>
    %88 = arith.mulf %86, %87 : vector<8x128xf32>
    %89 = arith.addf %63, %88 : vector<8x128xf32>
    %c-1551075696_i32 = arith.constant -1551075696 : i32
    %90 = arith.addi %10, %c-1551075696_i32 : i32
    %c-1640531527_i32_22 = arith.constant -1640531527 : i32
    %91 = vector.broadcast %c-1640531527_i32_22 : i32 to vector<8x128xi32>
    %92 = arith.muli %7, %91 : vector<8x128xi32>
    %93 = vector.broadcast %90 : i32 to vector<8x128xi32>
    %94 = arith.addi %92, %93 : vector<8x128xi32>
    %c16_i32_23 = arith.constant 16 : i32
    %95 = vector.broadcast %c16_i32_23 : i32 to vector<8x128xi32>
    %96 = arith.shrui %94, %95 : vector<8x128xi32>
    %97 = arith.xori %94, %96 : vector<8x128xi32>
    %c2146121005_i32_24 = arith.constant 2146121005 : i32
    %98 = vector.broadcast %c2146121005_i32_24 : i32 to vector<8x128xi32>
    %99 = arith.muli %97, %98 : vector<8x128xi32>
    %c15_i32_25 = arith.constant 15 : i32
    %100 = vector.broadcast %c15_i32_25 : i32 to vector<8x128xi32>
    %101 = arith.shrui %99, %100 : vector<8x128xi32>
    %102 = arith.xori %99, %101 : vector<8x128xi32>
    %c-2073254261_i32_26 = arith.constant -2073254261 : i32
    %103 = vector.broadcast %c-2073254261_i32_26 : i32 to vector<8x128xi32>
    %104 = arith.muli %102, %103 : vector<8x128xi32>
    %c16_i32_27 = arith.constant 16 : i32
    %105 = vector.broadcast %c16_i32_27 : i32 to vector<8x128xi32>
    %106 = arith.shrui %104, %105 : vector<8x128xi32>
    %107 = arith.xori %104, %106 : vector<8x128xi32>
    %c9_i32_28 = arith.constant 9 : i32
    %108 = vector.broadcast %c9_i32_28 : i32 to vector<8x128xi32>
    %109 = arith.shrui %107, %108 : vector<8x128xi32>
    %110 = arith.sitofp %109 : vector<8x128xi32> to vector<8x128xf32>
    %cst_29 = arith.constant 5.000000e-01 : f32
    %111 = vector.broadcast %cst_29 : f32 to vector<8x128xf32>
    %112 = arith.addf %110, %111 : vector<8x128xf32>
    %cst_30 = arith.constant 1.1920929E-7 : f32
    %113 = vector.broadcast %cst_30 : f32 to vector<8x128xf32>
    %114 = arith.mulf %112, %113 : vector<8x128xf32>
    %115 = arith.addf %89, %114 : vector<8x128xf32>
    %c208639028_i32 = arith.constant 208639028 : i32
    %116 = arith.addi %10, %c208639028_i32 : i32
    %c-1640531527_i32_31 = arith.constant -1640531527 : i32
    %117 = vector.broadcast %c-1640531527_i32_31 : i32 to vector<8x128xi32>
    %118 = arith.muli %7, %117 : vector<8x128xi32>
    %119 = vector.broadcast %116 : i32 to vector<8x128xi32>
    %120 = arith.addi %118, %119 : vector<8x128xi32>
    %c16_i32_32 = arith.constant 16 : i32
    %121 = vector.broadcast %c16_i32_32 : i32 to vector<8x128xi32>
    %122 = arith.shrui %120, %121 : vector<8x128xi32>
    %123 = arith.xori %120, %122 : vector<8x128xi32>
    %c2146121005_i32_33 = arith.constant 2146121005 : i32
    %124 = vector.broadcast %c2146121005_i32_33 : i32 to vector<8x128xi32>
    %125 = arith.muli %123, %124 : vector<8x128xi32>
    %c15_i32_34 = arith.constant 15 : i32
    %126 = vector.broadcast %c15_i32_34 : i32 to vector<8x128xi32>
    %127 = arith.shrui %125, %126 : vector<8x128xi32>
    %128 = arith.xori %125, %127 : vector<8x128xi32>
    %c-2073254261_i32_35 = arith.constant -2073254261 : i32
    %129 = vector.broadcast %c-2073254261_i32_35 : i32 to vector<8x128xi32>
    %130 = arith.muli %128, %129 : vector<8x128xi32>
    %c16_i32_36 = arith.constant 16 : i32
    %131 = vector.broadcast %c16_i32_36 : i32 to vector<8x128xi32>
    %132 = arith.shrui %130, %131 : vector<8x128xi32>
    %133 = arith.xori %130, %132 : vector<8x128xi32>
    %c9_i32_37 = arith.constant 9 : i32
    %134 = vector.broadcast %c9_i32_37 : i32 to vector<8x128xi32>
    %135 = arith.shrui %133, %134 : vector<8x128xi32>
    %136 = arith.sitofp %135 : vector<8x128xi32> to vector<8x128xf32>
    %cst_38 = arith.constant 5.000000e-01 : f32
    %137 = vector.broadcast %cst_38 : f32 to vector<8x128xf32>
    %138 = arith.addf %136, %137 : vector<8x128xf32>
    %cst_39 = arith.constant 1.1920929E-7 : f32
    %139 = vector.broadcast %cst_39 : f32 to vector<8x128xf32>
    %140 = arith.mulf %138, %139 : vector<8x128xf32>
    %141 = arith.addf %115, %140 : vector<8x128xf32>
    %c1968353752_i32 = arith.constant 1968353752 : i32
    %142 = arith.addi %10, %c1968353752_i32 : i32
    %c-1640531527_i32_40 = arith.constant -1640531527 : i32
    %143 = vector.broadcast %c-1640531527_i32_40 : i32 to vector<8x128xi32>
    %144 = arith.muli %7, %143 : vector<8x128xi32>
    %145 = vector.broadcast %142 : i32 to vector<8x128xi32>
    %146 = arith.addi %144, %145 : vector<8x128xi32>
    %c16_i32_41 = arith.constant 16 : i32
    %147 = vector.broadcast %c16_i32_41 : i32 to vector<8x128xi32>
    %148 = arith.shrui %146, %147 : vector<8x128xi32>
    %149 = arith.xori %146, %148 : vector<8x128xi32>
    %c2146121005_i32_42 = arith.constant 2146121005 : i32
    %150 = vector.broadcast %c2146121005_i32_42 : i32 to vector<8x128xi32>
    %151 = arith.muli %149, %150 : vector<8x128xi32>
    %c15_i32_43 = arith.constant 15 : i32
    %152 = vector.broadcast %c15_i32_43 : i32 to vector<8x128xi32>
    %153 = arith.shrui %151, %152 : vector<8x128xi32>
    %154 = arith.xori %151, %153 : vector<8x128xi32>
    %c-2073254261_i32_44 = arith.constant -2073254261 : i32
    %155 = vector.broadcast %c-2073254261_i32_44 : i32 to vector<8x128xi32>
    %156 = arith.muli %154, %155 : vector<8x128xi32>
    %c16_i32_45 = arith.constant 16 : i32
    %157 = vector.broadcast %c16_i32_45 : i32 to vector<8x128xi32>
    %158 = arith.shrui %156, %157 : vector<8x128xi32>
    %159 = arith.xori %156, %158 : vector<8x128xi32>
    %c9_i32_46 = arith.constant 9 : i32
    %160 = vector.broadcast %c9_i32_46 : i32 to vector<8x128xi32>
    %161 = arith.shrui %159, %160 : vector<8x128xi32>
    %162 = arith.sitofp %161 : vector<8x128xi32> to vector<8x128xf32>
    %cst_47 = arith.constant 5.000000e-01 : f32
    %163 = vector.broadcast %cst_47 : f32 to vector<8x128xf32>
    %164 = arith.addf %162, %163 : vector<8x128xf32>
    %cst_48 = arith.constant 1.1920929E-7 : f32
    %165 = vector.broadcast %cst_48 : f32 to vector<8x128xf32>
    %166 = arith.mulf %164, %165 : vector<8x128xf32>
    %167 = arith.addf %141, %166 : vector<8x128xf32>
    %c-566898820_i32 = arith.constant -566898820 : i32
    %168 = arith.addi %10, %c-566898820_i32 : i32
    %c-1640531527_i32_49 = arith.constant -1640531527 : i32
    %169 = vector.broadcast %c-1640531527_i32_49 : i32 to vector<8x128xi32>
    %170 = arith.muli %7, %169 : vector<8x128xi32>
    %171 = vector.broadcast %168 : i32 to vector<8x128xi32>
    %172 = arith.addi %170, %171 : vector<8x128xi32>
    %c16_i32_50 = arith.constant 16 : i32
    %173 = vector.broadcast %c16_i32_50 : i32 to vector<8x128xi32>
    %174 = arith.shrui %172, %173 : vector<8x128xi32>
    %175 = arith.xori %172, %174 : vector<8x128xi32>
    %c2146121005_i32_51 = arith.constant 2146121005 : i32
    %176 = vector.broadcast %c2146121005_i32_51 : i32 to vector<8x128xi32>
    %177 = arith.muli %175, %176 : vector<8x128xi32>
    %c15_i32_52 = arith.constant 15 : i32
    %178 = vector.broadcast %c15_i32_52 : i32 to vector<8x128xi32>
    %179 = arith.shrui %177, %178 : vector<8x128xi32>
    %180 = arith.xori %177, %179 : vector<8x128xi32>
    %c-2073254261_i32_53 = arith.constant -2073254261 : i32
    %181 = vector.broadcast %c-2073254261_i32_53 : i32 to vector<8x128xi32>
    %182 = arith.muli %180, %181 : vector<8x128xi32>
    %c16_i32_54 = arith.constant 16 : i32
    %183 = vector.broadcast %c16_i32_54 : i32 to vector<8x128xi32>
    %184 = arith.shrui %182, %183 : vector<8x128xi32>
    %185 = arith.xori %182, %184 : vector<8x128xi32>
    %c9_i32_55 = arith.constant 9 : i32
    %186 = vector.broadcast %c9_i32_55 : i32 to vector<8x128xi32>
    %187 = arith.shrui %185, %186 : vector<8x128xi32>
    %188 = arith.sitofp %187 : vector<8x128xi32> to vector<8x128xf32>
    %cst_56 = arith.constant 5.000000e-01 : f32
    %189 = vector.broadcast %cst_56 : f32 to vector<8x128xf32>
    %190 = arith.addf %188, %189 : vector<8x128xf32>
    %cst_57 = arith.constant 1.1920929E-7 : f32
    %191 = vector.broadcast %cst_57 : f32 to vector<8x128xf32>
    %192 = arith.mulf %190, %191 : vector<8x128xf32>
    %193 = arith.addf %167, %192 : vector<8x128xf32>
    %c1192815904_i32 = arith.constant 1192815904 : i32
    %194 = arith.addi %10, %c1192815904_i32 : i32
    %c-1640531527_i32_58 = arith.constant -1640531527 : i32
    %195 = vector.broadcast %c-1640531527_i32_58 : i32 to vector<8x128xi32>
    %196 = arith.muli %7, %195 : vector<8x128xi32>
    %197 = vector.broadcast %194 : i32 to vector<8x128xi32>
    %198 = arith.addi %196, %197 : vector<8x128xi32>
    %c16_i32_59 = arith.constant 16 : i32
    %199 = vector.broadcast %c16_i32_59 : i32 to vector<8x128xi32>
    %200 = arith.shrui %198, %199 : vector<8x128xi32>
    %201 = arith.xori %198, %200 : vector<8x128xi32>
    %c2146121005_i32_60 = arith.constant 2146121005 : i32
    %202 = vector.broadcast %c2146121005_i32_60 : i32 to vector<8x128xi32>
    %203 = arith.muli %201, %202 : vector<8x128xi32>
    %c15_i32_61 = arith.constant 15 : i32
    %204 = vector.broadcast %c15_i32_61 : i32 to vector<8x128xi32>
    %205 = arith.shrui %203, %204 : vector<8x128xi32>
    %206 = arith.xori %203, %205 : vector<8x128xi32>
    %c-2073254261_i32_62 = arith.constant -2073254261 : i32
    %207 = vector.broadcast %c-2073254261_i32_62 : i32 to vector<8x128xi32>
    %208 = arith.muli %206, %207 : vector<8x128xi32>
    %c16_i32_63 = arith.constant 16 : i32
    %209 = vector.broadcast %c16_i32_63 : i32 to vector<8x128xi32>
    %210 = arith.shrui %208, %209 : vector<8x128xi32>
    %211 = arith.xori %208, %210 : vector<8x128xi32>
    %c9_i32_64 = arith.constant 9 : i32
    %212 = vector.broadcast %c9_i32_64 : i32 to vector<8x128xi32>
    %213 = arith.shrui %211, %212 : vector<8x128xi32>
    %214 = arith.sitofp %213 : vector<8x128xi32> to vector<8x128xf32>
    %cst_65 = arith.constant 5.000000e-01 : f32
    %215 = vector.broadcast %cst_65 : f32 to vector<8x128xf32>
    %216 = arith.addf %214, %215 : vector<8x128xf32>
    %cst_66 = arith.constant 1.1920929E-7 : f32
    %217 = vector.broadcast %cst_66 : f32 to vector<8x128xf32>
    %218 = arith.mulf %216, %217 : vector<8x128xf32>
    %219 = arith.addf %193, %218 : vector<8x128xf32>
    %c-1342436668_i32 = arith.constant -1342436668 : i32
    %220 = arith.addi %10, %c-1342436668_i32 : i32
    %c-1640531527_i32_67 = arith.constant -1640531527 : i32
    %221 = vector.broadcast %c-1640531527_i32_67 : i32 to vector<8x128xi32>
    %222 = arith.muli %7, %221 : vector<8x128xi32>
    %223 = vector.broadcast %220 : i32 to vector<8x128xi32>
    %224 = arith.addi %222, %223 : vector<8x128xi32>
    %c16_i32_68 = arith.constant 16 : i32
    %225 = vector.broadcast %c16_i32_68 : i32 to vector<8x128xi32>
    %226 = arith.shrui %224, %225 : vector<8x128xi32>
    %227 = arith.xori %224, %226 : vector<8x128xi32>
    %c2146121005_i32_69 = arith.constant 2146121005 : i32
    %228 = vector.broadcast %c2146121005_i32_69 : i32 to vector<8x128xi32>
    %229 = arith.muli %227, %228 : vector<8x128xi32>
    %c15_i32_70 = arith.constant 15 : i32
    %230 = vector.broadcast %c15_i32_70 : i32 to vector<8x128xi32>
    %231 = arith.shrui %229, %230 : vector<8x128xi32>
    %232 = arith.xori %229, %231 : vector<8x128xi32>
    %c-2073254261_i32_71 = arith.constant -2073254261 : i32
    %233 = vector.broadcast %c-2073254261_i32_71 : i32 to vector<8x128xi32>
    %234 = arith.muli %232, %233 : vector<8x128xi32>
    %c16_i32_72 = arith.constant 16 : i32
    %235 = vector.broadcast %c16_i32_72 : i32 to vector<8x128xi32>
    %236 = arith.shrui %234, %235 : vector<8x128xi32>
    %237 = arith.xori %234, %236 : vector<8x128xi32>
    %c9_i32_73 = arith.constant 9 : i32
    %238 = vector.broadcast %c9_i32_73 : i32 to vector<8x128xi32>
    %239 = arith.shrui %237, %238 : vector<8x128xi32>
    %240 = arith.sitofp %239 : vector<8x128xi32> to vector<8x128xf32>
    %cst_74 = arith.constant 5.000000e-01 : f32
    %241 = vector.broadcast %cst_74 : f32 to vector<8x128xf32>
    %242 = arith.addf %240, %241 : vector<8x128xf32>
    %cst_75 = arith.constant 1.1920929E-7 : f32
    %243 = vector.broadcast %cst_75 : f32 to vector<8x128xf32>
    %244 = arith.mulf %242, %243 : vector<8x128xf32>
    %245 = arith.addf %219, %244 : vector<8x128xf32>
    %c417278056_i32 = arith.constant 417278056 : i32
    %246 = arith.addi %10, %c417278056_i32 : i32
    %c-1640531527_i32_76 = arith.constant -1640531527 : i32
    %247 = vector.broadcast %c-1640531527_i32_76 : i32 to vector<8x128xi32>
    %248 = arith.muli %7, %247 : vector<8x128xi32>
    %249 = vector.broadcast %246 : i32 to vector<8x128xi32>
    %250 = arith.addi %248, %249 : vector<8x128xi32>
    %c16_i32_77 = arith.constant 16 : i32
    %251 = vector.broadcast %c16_i32_77 : i32 to vector<8x128xi32>
    %252 = arith.shrui %250, %251 : vector<8x128xi32>
    %253 = arith.xori %250, %252 : vector<8x128xi32>
    %c2146121005_i32_78 = arith.constant 2146121005 : i32
    %254 = vector.broadcast %c2146121005_i32_78 : i32 to vector<8x128xi32>
    %255 = arith.muli %253, %254 : vector<8x128xi32>
    %c15_i32_79 = arith.constant 15 : i32
    %256 = vector.broadcast %c15_i32_79 : i32 to vector<8x128xi32>
    %257 = arith.shrui %255, %256 : vector<8x128xi32>
    %258 = arith.xori %255, %257 : vector<8x128xi32>
    %c-2073254261_i32_80 = arith.constant -2073254261 : i32
    %259 = vector.broadcast %c-2073254261_i32_80 : i32 to vector<8x128xi32>
    %260 = arith.muli %258, %259 : vector<8x128xi32>
    %c16_i32_81 = arith.constant 16 : i32
    %261 = vector.broadcast %c16_i32_81 : i32 to vector<8x128xi32>
    %262 = arith.shrui %260, %261 : vector<8x128xi32>
    %263 = arith.xori %260, %262 : vector<8x128xi32>
    %c9_i32_82 = arith.constant 9 : i32
    %264 = vector.broadcast %c9_i32_82 : i32 to vector<8x128xi32>
    %265 = arith.shrui %263, %264 : vector<8x128xi32>
    %266 = arith.sitofp %265 : vector<8x128xi32> to vector<8x128xf32>
    %cst_83 = arith.constant 5.000000e-01 : f32
    %267 = vector.broadcast %cst_83 : f32 to vector<8x128xf32>
    %268 = arith.addf %266, %267 : vector<8x128xf32>
    %cst_84 = arith.constant 1.1920929E-7 : f32
    %269 = vector.broadcast %cst_84 : f32 to vector<8x128xf32>
    %270 = arith.mulf %268, %269 : vector<8x128xf32>
    %271 = arith.addf %245, %270 : vector<8x128xf32>
    %c-2117974516_i32 = arith.constant -2117974516 : i32
    %272 = arith.addi %10, %c-2117974516_i32 : i32
    %c-1640531527_i32_85 = arith.constant -1640531527 : i32
    %273 = vector.broadcast %c-1640531527_i32_85 : i32 to vector<8x128xi32>
    %274 = arith.muli %7, %273 : vector<8x128xi32>
    %275 = vector.broadcast %272 : i32 to vector<8x128xi32>
    %276 = arith.addi %274, %275 : vector<8x128xi32>
    %c16_i32_86 = arith.constant 16 : i32
    %277 = vector.broadcast %c16_i32_86 : i32 to vector<8x128xi32>
    %278 = arith.shrui %276, %277 : vector<8x128xi32>
    %279 = arith.xori %276, %278 : vector<8x128xi32>
    %c2146121005_i32_87 = arith.constant 2146121005 : i32
    %280 = vector.broadcast %c2146121005_i32_87 : i32 to vector<8x128xi32>
    %281 = arith.muli %279, %280 : vector<8x128xi32>
    %c15_i32_88 = arith.constant 15 : i32
    %282 = vector.broadcast %c15_i32_88 : i32 to vector<8x128xi32>
    %283 = arith.shrui %281, %282 : vector<8x128xi32>
    %284 = arith.xori %281, %283 : vector<8x128xi32>
    %c-2073254261_i32_89 = arith.constant -2073254261 : i32
    %285 = vector.broadcast %c-2073254261_i32_89 : i32 to vector<8x128xi32>
    %286 = arith.muli %284, %285 : vector<8x128xi32>
    %c16_i32_90 = arith.constant 16 : i32
    %287 = vector.broadcast %c16_i32_90 : i32 to vector<8x128xi32>
    %288 = arith.shrui %286, %287 : vector<8x128xi32>
    %289 = arith.xori %286, %288 : vector<8x128xi32>
    %c9_i32_91 = arith.constant 9 : i32
    %290 = vector.broadcast %c9_i32_91 : i32 to vector<8x128xi32>
    %291 = arith.shrui %289, %290 : vector<8x128xi32>
    %292 = arith.sitofp %291 : vector<8x128xi32> to vector<8x128xf32>
    %cst_92 = arith.constant 5.000000e-01 : f32
    %293 = vector.broadcast %cst_92 : f32 to vector<8x128xf32>
    %294 = arith.addf %292, %293 : vector<8x128xf32>
    %cst_93 = arith.constant 1.1920929E-7 : f32
    %295 = vector.broadcast %cst_93 : f32 to vector<8x128xf32>
    %296 = arith.mulf %294, %295 : vector<8x128xf32>
    %297 = arith.addf %271, %296 : vector<8x128xf32>
    %c-358259792_i32 = arith.constant -358259792 : i32
    %298 = arith.addi %10, %c-358259792_i32 : i32
    %c-1640531527_i32_94 = arith.constant -1640531527 : i32
    %299 = vector.broadcast %c-1640531527_i32_94 : i32 to vector<8x128xi32>
    %300 = arith.muli %7, %299 : vector<8x128xi32>
    %301 = vector.broadcast %298 : i32 to vector<8x128xi32>
    %302 = arith.addi %300, %301 : vector<8x128xi32>
    %c16_i32_95 = arith.constant 16 : i32
    %303 = vector.broadcast %c16_i32_95 : i32 to vector<8x128xi32>
    %304 = arith.shrui %302, %303 : vector<8x128xi32>
    %305 = arith.xori %302, %304 : vector<8x128xi32>
    %c2146121005_i32_96 = arith.constant 2146121005 : i32
    %306 = vector.broadcast %c2146121005_i32_96 : i32 to vector<8x128xi32>
    %307 = arith.muli %305, %306 : vector<8x128xi32>
    %c15_i32_97 = arith.constant 15 : i32
    %308 = vector.broadcast %c15_i32_97 : i32 to vector<8x128xi32>
    %309 = arith.shrui %307, %308 : vector<8x128xi32>
    %310 = arith.xori %307, %309 : vector<8x128xi32>
    %c-2073254261_i32_98 = arith.constant -2073254261 : i32
    %311 = vector.broadcast %c-2073254261_i32_98 : i32 to vector<8x128xi32>
    %312 = arith.muli %310, %311 : vector<8x128xi32>
    %c16_i32_99 = arith.constant 16 : i32
    %313 = vector.broadcast %c16_i32_99 : i32 to vector<8x128xi32>
    %314 = arith.shrui %312, %313 : vector<8x128xi32>
    %315 = arith.xori %312, %314 : vector<8x128xi32>
    %c9_i32_100 = arith.constant 9 : i32
    %316 = vector.broadcast %c9_i32_100 : i32 to vector<8x128xi32>
    %317 = arith.shrui %315, %316 : vector<8x128xi32>
    %318 = arith.sitofp %317 : vector<8x128xi32> to vector<8x128xf32>
    %cst_101 = arith.constant 5.000000e-01 : f32
    %319 = vector.broadcast %cst_101 : f32 to vector<8x128xf32>
    %320 = arith.addf %318, %319 : vector<8x128xf32>
    %cst_102 = arith.constant 1.1920929E-7 : f32
    %321 = vector.broadcast %cst_102 : f32 to vector<8x128xf32>
    %322 = arith.mulf %320, %321 : vector<8x128xf32>
    %323 = arith.addf %297, %322 : vector<8x128xf32>
    %cst_103 = arith.constant 6.000000e+00 : f32
    %324 = vector.broadcast %cst_103 : f32 to vector<8x128xf32>
    %325 = arith.subf %323, %324 : vector<8x128xf32>
    %c0_104 = arith.constant 0 : index
    %c0_105 = arith.constant 0 : index
    %326 = vector.load %arg2[%c0_104, %c0_105] : memref<8x128xf32, #tpu.memory_space<vmem>>, vector<8x128xf32>
    tpu.vector_store %arg2[%c0_104, %c0_105], %325 {strides = array<i32>} : memref<8x128xf32, #tpu.memory_space<vmem>>, vector<8x128xf32>,
    return
  }
  func.func @transform_0(%arg0: i32, %arg1: memref<1xi32, #tpu.memory_space<smem>>) -> (i32, i32) {
    %c0_i32 = arith.constant 0 : i32
    %c0_i32_0 = arith.constant 0 : i32
    return %arg0, %c0_i32 : i32, i32
  }
}

</mosaic_0001>

<llo_original>
// kernel: tpu_custom_call.1
$region0: #{tpu_custom_call.1}
  #allocation0 [shape = 'u32[]', space=smem, size = 0x4, offset = 0x4, fixed_abs, tag = 'smem constant byte address 0x4 - core index']
  #allocation1 [shape = 'u32[72,128]{1,0:T(1,128)}', space=vmem, size = 0x9000, scoped, tag = 'internal scratch']
  #allocation2 [shape = 's32[1]{0}', space=sflag, size = 0x4, scoped, tag = 'scoped memory for tpu_custom_call.1']
  #allocation3 [shape = 's32[1]{0:T(128)S(6)}', space=smem, size = 0x200, scoped, tag = 'prefetched SMEM operand 0']
  %s0 = inlined_call_operand.<no memory space> [shape: s32[1], index: 0, kind: input, shape index: {}]
  %s1 = inlined_call_operand.hbm [shape: f32[8,128], index: 1, kind: output, shape index: {}]
  %s2 = sld [smem:[#allocation0]]
  $region10: #{tpu_custom_call.1} parent=0
    _
  %s4 = ssub.s32 1, %s2
  %s5 = scalar_select 0, %s4, %s2
  %6 = sst [smem:[#allocation3]] %s0
  $region1: #{tpu_custom_call.1} parent=0
    #allocation4 [shape = 'u8[4096]{0}', space=vmem, size = 0x1000, scoped, tag = 'output window, operand 0, single buffered']
    #allocation5 [shape = 's32[1]{0}', space=sflag, size = 0x4, scoped, tag = 'scoped memory for tpu_custom_call.1']
    %7 = vsyncpa [#allocation5], 0
    %s8 = smul.u32 0, 8
    %v9 = vlaneseq
    %v10 = vshrl.u32 %v9, 7
    %v11 = vlaneseq
    %v12 = vand.u32 %v11, 127
    %v13 = vstv %s8
    %v14 = vadd.s32 %v13, %v10
    %v15 = vmul.u32 %v14, 128
    %v16 = vadd.s32 %v15, %v12
    %s17 = sld [smem:[#allocation3]]
    %s18 = smul.u32 %s17, 2246822507
    %s19 = sadd.s32 %s18, 119183197
    %v20 = vmul.u32 %v16, 2654435769
    %v21 = vstv %s19
    %v22 = vadd.s32 %v20, %v21
    %v23 = vshrl.u32 %v22, 16
    %v24 = vxor.u32 %v22, %v23
    %v25 = vmul.u32 %v24, 2146121005
    %v26 = vshrl.u32 %v25, 15
    %v27 = vxor.u32 %v25, %v26
    %v28 = vmul.u32 %v27, 2221713035
    %v29 = vshrl.u32 %v28, 16
    %v30 = vxor.u32 %v28, %v29
    %v31 = vshrl.u32 %v30, 9
    %v32 = vcvt.s32.f32 %v31
    %v33 = vadd.f32 %v32, 0.5
    %v34 = vmul.f32 %v33, 1.1920929e-07
    %v35 = vadd.f32 %v34, 0.0
    %s36 = sadd.s32 %s18, 1878897921
    %v37 = vstv %s36
    %v38 = vadd.s32 %v20, %v37
    %v39 = vshrl.u32 %v38, 16
    %v40 = vxor.u32 %v38, %v39
    %v41 = vmul.u32 %v40, 2146121005
    %v42 = vshrl.u32 %v41, 15
    %v43 = vxor.u32 %v41, %v42
    %v44 = vmul.u32 %v43, 2221713035
    %v45 = vshrl.u32 %v44, 16
    %v46 = vxor.u32 %v44, %v45
    %v47 = vshrl.u32 %v46, 9
    %v48 = vcvt.s32.f32 %v47
    %v49 = vadd.f32 %v48, 0.5
    %v50 = vmul.f32 %v49, 1.1920929e-07
    %v51 = vadd.f32 %v35, %v50
    %s52 = sadd.s32 %s18, 3638612645
    %v53 = vstv %s52
    %v54 = vadd.s32 %v20, %v53
    %v55 = vshrl.u32 %v54, 16
    %v56 = vxor.u32 %v54, %v55
    %v57 = vmul.u32 %v56, 2146121005
    %v58 = vshrl.u32 %v57, 15
    %v59 = vxor.u32 %v57, %v58
    %v60 = vmul.u32 %v59, 2221713035
    %v61 = vshrl.u32 %v60, 16
    %v62 = vxor.u32 %v60, %v61
    %v63 = vshrl.u32 %v62, 9
    %v64 = vcvt.s32.f32 %v63
    %v65 = vadd.f32 %v64, 0.5
    %v66 = vmul.f32 %v65, 1.1920929e-07
    %v67 = vadd.f32 %v51, %v66
    %s68 = sadd.s32 %s18, 1103360073
    %v69 = vstv %s68
    %v70 = vadd.s32 %v20, %v69
    %v71 = vshrl.u32 %v70, 16
    %v72 = vxor.u32 %v70, %v71
    %v73 = vmul.u32 %v72, 2146121005
    %v74 = vshrl.u32 %v73, 15
    %v75 = vxor.u32 %v73, %v74
    %v76 = vmul.u32 %v75, 2221713035
    %v77 = vshrl.u32 %v76, 16
    %v78 = vxor.u32 %v76, %v77
    %v79 = vshrl.u32 %v78, 9
    %v80 = vcvt.s32.f32 %v79
    %v81 = vadd.f32 %v80, 0.5
    %v82 = vmul.f32 %v81, 1.1920929e-07
    %v83 = vadd.f32 %v67, %v82
    %s84 = sadd.s32 %s18, 2863074797
    %v85 = vstv %s84
    %v86 = vadd.s32 %v20, %v85
    %v87 = vshrl.u32 %v86, 16
    %v88 = vxor.u32 %v86, %v87
    %v89 = vmul.u32 %v88, 2146121005
    %v90 = vshrl.u32 %v89, 15
    %v91 = vxor.u32 %v89, %v90
    %v92 = vmul.u32 %v91, 2221713035
    %v93 = vshrl.u32 %v92, 16
    %v94 = vxor.u32 %v92, %v93
    %v95 = vshrl.u32 %v94, 9
    %v96 = vcvt.s32.f32 %v95
    %v97 = vadd.f32 %v96, 0.5
    %v98 = vmul.f32 %v97, 1.1920929e-07
    %v99 = vadd.f32 %v83, %v98
    %s100 = sadd.s32 %s18, 327822225
    %v101 = vstv %s100
    %v102 = vadd.s32 %v20, %v101
    %v103 = vshrl.u32 %v102, 16
    %v104 = vxor.u32 %v102, %v103
    %v105 = vmul.u32 %v104, 2146121005
    %v106 = vshrl.u32 %v105, 15
    %v107 = vxor.u32 %v105, %v106
    %v108 = vmul.u32 %v107, 2221713035
    %v109 = vshrl.u32 %v108, 16
    %v110 = vxor.u32 %v108, %v109
    %v111 = vshrl.u32 %v110, 9
    %v112 = vcvt.s32.f32 %v111
    %v113 = vadd.f32 %v112, 0.5
    %v114 = vmul.f32 %v113, 1.1920929e-07
    %v115 = vadd.f32 %v99, %v114
    %s116 = sadd.s32 %s18, 2087536949
    %v117 = vstv %s116
    %v118 = vadd.s32 %v20, %v117
    %v119 = vshrl.u32 %v118, 16
    %v120 = vxor.u32 %v118, %v119
    %v121 = vmul.u32 %v120, 2146121005
    %v122 = vshrl.u32 %v121, 15
    %v123 = vxor.u32 %v121, %v122
    %v124 = vmul.u32 %v123, 2221713035
    %v125 = vshrl.u32 %v124, 16
    %v126 = vxor.u32 %v124, %v125
    %v127 = vshrl.u32 %v126, 9
    %v128 = vcvt.s32.f32 %v127
    %v129 = vadd.f32 %v128, 0.5
    %v130 = vmul.f32 %v129, 1.1920929e-07
    %v131 = vadd.f32 %v115, %v130
    %s132 = sadd.s32 %s18, 3847251673
    %v133 = vstv %s132
    %v134 = vadd.s32 %v20, %v133
    %v135 = vshrl.u32 %v134, 16
    %v136 = vxor.u32 %v134, %v135
    %v137 = vmul.u32 %v136, 2146121005
    %v138 = vshrl.u32 %v137, 15
    %v139 = vxor.u32 %v137, %v138
    %v140 = vmul.u32 %v139, 2221713035
    %v141 = vshrl.u32 %v140, 16
    %v142 = vxor.u32 %v140, %v141
    %v143 = vshrl.u32 %v142, 9
    %v144 = vcvt.s32.f32 %v143
    %v145 = vadd.f32 %v144, 0.5
    %v146 = vmul.f32 %v145, 1.1920929e-07
    %v147 = vadd.f32 %v131, %v146
    %s148 = sadd.s32 %s18, 1311999101
    %v149 = vstv %s148
    %v150 = vadd.s32 %v20, %v149
    %v151 = vshrl.u32 %v150, 16
    %v152 = vxor.u32 %v150, %v151
    %v153 = vmul.u32 %v152, 2146121005
    %v154 = vshrl.u32 %v153, 15
    %v155 = vxor.u32 %v153, %v154
    %v156 = vmul.u32 %v155, 2221713035
    %v157 = vshrl.u32 %v156, 16
    %v158 = vxor.u32 %v156, %v157
    %v159 = vshrl.u32 %v158, 9
    %v160 = vcvt.s32.f32 %v159
    %v161 = vadd.f32 %v160, 0.5
    %v162 = vmul.f32 %v161, 1.1920929e-07
    %v163 = vadd.f32 %v147, %v162
    %s164 = sadd.s32 %s18, 3071713825
    %v165 = vstv %s164
    %v166 = vadd.s32 %v20, %v165
    %v167 = vshrl.u32 %v166, 16
    %v168 = vxor.u32 %v166, %v167
    %v169 = vmul.u32 %v168, 2146121005
    %v170 = vshrl.u32 %v169, 15
    %v171 = vxor.u32 %v169, %v170
    %v172 = vmul.u32 %v171, 2221713035
    %v173 = vshrl.u32 %v172, 16
    %v174 = vxor.u32 %v172, %v173
    %v175 = vshrl.u32 %v174, 9
    %v176 = vcvt.s32.f32 %v175
    %v177 = vadd.f32 %v176, 0.5
    %v178 = vmul.f32 %v177, 1.1920929e-07
    %v179 = vadd.f32 %v163, %v178
    %s180 = sadd.s32 %s18, 536461253
    %v181 = vstv %s180
    %v182 = vadd.s32 %v20, %v181
    %v183 = vshrl.u32 %v182, 16
    %v184 = vxor.u32 %v182, %v183
    %v185 = vmul.u32 %v184, 2146121005
    %v186 = vshrl.u32 %v185, 15
    %v187 = vxor.u32 %v185, %v186
    %v188 = vmul.u32 %v187, 2221713035
    %v189 = vshrl.u32 %v188, 16
    %v190 = vxor.u32 %v188, %v189
    %v191 = vshrl.u32 %v190, 9
    %v192 = vcvt.s32.f32 %v191
    %v193 = vadd.f32 %v192, 0.5
    %v194 = vmul.f32 %v193, 1.1920929e-07
    %v195 = vadd.f32 %v179, %v194
    %s196 = sadd.s32 %s18, 2296175977
    %v197 = vstv %s196
    %v198 = vadd.s32 %v20, %v197
    %v199 = vshrl.u32 %v198, 16
    %v200 = vxor.u32 %v198, %v199
    %v201 = vmul.u32 %v200, 2146121005
    %v202 = vshrl.u32 %v201, 15
    %v203 = vxor.u32 %v201, %v202
    %v204 = vmul.u32 %v203, 2221713035
    %v205 = vshrl.u32 %v204, 16
    %v206 = vxor.u32 %v204, %v205
    %v207 = vshrl.u32 %v206, 9
    %v208 = vcvt.s32.f32 %v207
    %v209 = vadd.f32 %v208, 0.5
    %v210 = vmul.f32 %v209, 1.1920929e-07
    %v211 = vadd.f32 %v195, %v210
    %v212 = vsub.f32 %v211, 6.0
    %213 = vst [vmem:[#allocation4] sm:$0xff] %v212
    // Predicated region
    $region2: #{tpu_custom_call.1} parent=1 // pred_check
      _
    $region3: #{tpu_custom_call.1} parent=1 // pred_check_branch
      %215 = sbr.rel (0) target = $region5
    $region4: #{tpu_custom_call.1} parent=1 // pred_region
      %217 = vsyncadd [#allocation5], 0
      %s219 = sshll.u32 [#allocation4], 4
      %s220 = int_to_ptr.vmem [resolvable:$true] %s219
      %s221 = sshll.u32 %s1, 4
      %s222 = int_to_ptr.hbm [resolvable:$true] %s221
      %224 = dma.vmem_to_hbm [thread:$0]  %s220, 128, %s222, [#allocation5]
    $region5: #{tpu_custom_call.1} parent=1 // pred_fallthru
      _
    // Predicated region
    $region6: #{tpu_custom_call.1} parent=1 // pred_check
      _
    $region7: #{tpu_custom_call.1} parent=1 // pred_check_branch
      %226 = sbr.rel (0) target = $region9
    $region8: #{tpu_custom_call.1} parent=1 // pred_region
      %228 = dma.done [#allocation5], 128
    $region9: #{tpu_custom_call.1} parent=1 // pred_fallthru
      _
    %229 = vsyncpa [#allocation5], 1

</llo_original>
